<compile_context>
chip_gen: v5e
topology: v5e:2x2
jax: 0.10.0
libtpu: 0.0.40
codegen_flags: <defaults>
</compile_context>

<pallas_src>
import functools

import numpy as np
import jax
import jax.numpy as jnp
from jax.experimental import pallas as pl
from jax.experimental.pallas import tpu as pltpu


# --------------------------------------------------------------------------
# Graph construction (HandsGraph + cluster graph) — numpy glue
# --------------------------------------------------------------------------
def hands_graph_adjacency():
    num_nodes = 21
    inward = [(0, 1), (0, 5), (0, 17), (5, 9), (9, 13), (13, 17), (1, 2), (2, 3),
              (3, 4), (5, 6), (6, 7), (7, 8), (9, 10), (10, 11), (11, 12),
              (13, 14), (14, 15), (15, 16), (17, 18), (18, 19), (19, 20)]
    outward = [(j, i) for (i, j) in inward]
    edges = inward + outward
    A = np.zeros((num_nodes, num_nodes), np.float32)
    for e in edges:
        A[e] = 1.0
    A_I = A.copy()
    for i in range(num_nodes):
        A_I[i, i] = 1.0
    return A, A_I


def sym_normalize(A):
    deg = A.sum(-1)
    d = 1.0 / np.sqrt(np.maximum(deg, 1e-6))
    return (A * d[:, None]) * d[None, :]


def multiscale_adjacency(A_I, num_scales):
    V = A_I.shape[0]
    scales, P = [], np.eye(V, dtype=np.float32)
    for _ in range(num_scales):
        scales.append(sym_normalize(np.minimum(P, 1.0)))
        P = P @ A_I
    return np.stack(scales, 0).astype(np.float32)          # (K, V, V)


def cluster_graph_adjacency():
    # 'mediapipe_six_hand_cluster': palm(0) connected to each finger cluster.
    A = np.eye(6, dtype=np.float32)
    for f in range(1, 6):
        A[0, f] = 1.0
        A[f, 0] = 1.0
    return sym_normalize(A)[None].astype(np.float32)        # (1, 6, 6)


# MediapipeHandPooling cluster index groups (original node ids).
PALM = (0, 1, 5, 9, 13, 17)
THUMB, INDEX, MIDDLE = (2, 3, 4), (6, 7, 8), (10, 11, 12)
RING, PINKY = (14, 15, 16), (18, 19, 20)
CLUSTERS_21 = (PALM, THUMB, INDEX, MIDDLE, RING, PINKY)

# Node permutation that makes every cluster contiguous, and the resulting
# contiguous (start, stop) node ranges in the permuted order.
NODE_ORDER = tuple(v for g in CLUSTERS_21 for v in g)        # len 21
CLUSTER_RANGES = ((0, 6), (6, 9), (9, 12), (12, 15), (15, 18), (18, 21))


def _round_up(x, m):
    return ((x + m - 1) // m) * m


# --------------------------------------------------------------------------
# Fused Pallas kernel: GCN(21) -> cluster max-pool -> GCN(6), one block of frames
# --------------------------------------------------------------------------
def _gesture_kernel(x_ref, m1_ref, b1_ref, m2_ref, b2_ref, o_ref, *,
                    hid, ranges, do_cluster):
    # Stage 1: fused multi-scale GCN over 21 nodes as ONE lane-dense matmul.
    #   x_ref: (TB, 21*Cin) bf16, m1_ref: (21*Cin, 21*H) bf16 (cluster-permuted
    #   output node order), b1_ref: (1, 21*H) f32.
    h = jnp.dot(x_ref[...], m1_ref[...], preferred_element_type=jnp.float32)
    h = jnp.maximum(h + b1_ref[...], 0.0)                    # (TB, 21*H) f32

    if not do_cluster:
        o_ref[...] = h.astype(o_ref.dtype)
        return

    # Stage 2: MediapipeHandPooling(last=False): 21 -> 6 cluster max.
    # Clusters are contiguous node ranges after the output-node permutation,
    # so this is a tree of static lane-slice maxima (no masks, no extra DMA).
    parts = []
    for (s, e) in ranges:                                    # static unroll
        acc = h[:, s * hid:(s + 1) * hid]
        for v in range(s + 1, e):
            acc = jnp.maximum(acc, h[:, v * hid:(v + 1) * hid])
        parts.append(acc)
    pooled = jnp.concatenate(parts, axis=-1)                 # (TB, 6*H) f32
    # NOTE: relu_between would be applied here, but pooled is already >= 0
    # (ReLU precedes the max), so it is a mathematical no-op with this stand-in.

    # Stage 3: STGCN stand-in — spatial GCN over the 6-node cluster graph,
    # again fused to a single matmul.  MediapipeHandPooling(last=True) over the
    # 6 singleton clusters is an identity and is intentionally omitted.
    z = jnp.dot(pooled.astype(m2_ref.dtype), m2_ref[...],
                preferred_element_type=jnp.float32)
    z = jnp.maximum(z + b2_ref[...], 0.0)                    # (TB, 6*H) f32
    o_ref[...] = z.astype(o_ref.dtype)


# --------------------------------------------------------------------------
# GestureExtractor: parameters + forward wrapper
# --------------------------------------------------------------------------
def init_params(key, num_gcn_scales, in_channels, hid_dim):
    H = hid_dim[-1]
    _, A21_I = hands_graph_adjacency()
    k1, k2 = jax.random.split(key, 2)
    return {
        "A21": jnp.asarray(multiscale_adjacency(A21_I, num_gcn_scales)),    # (K,21,21)
        "A6": jnp.asarray(cluster_graph_adjacency()),                        # (1,6,6)
        "w_msg3d": jax.random.normal(k1, (num_gcn_scales, in_channels, H),
                                     jnp.float32) * (1.0 / np.sqrt(in_channels)),
        "b_msg3d": jnp.zeros((H,), jnp.float32),
        "w_stgcn": jax.random.normal(k2, (1, H, H), jnp.float32) * (1.0 / np.sqrt(H)),
        "b_stgcn": jnp.zeros((H,), jnp.float32),
    }


def _fuse_weights(params, do_cluster):
    """Fold multi-scale adjacency and per-scale weights into single matrices."""
    A21, W1 = params["A21"], params["w_msg3d"]              # (K,21,21), (K,Cin,H)
    K, V, _ = A21.shape
    Cin, H = W1.shape[1], W1.shape[2]
    order = np.asarray(NODE_ORDER if do_cluster else tuple(range(V)), np.int32)
    A21p = A21[:, order, :]                                  # permute OUTPUT nodes
    # M1[(w,i),(v,o)] = sum_k A_k[v,w] * W_k[i,o]
    M1 = jnp.einsum("kvw,kio->wivo", A21p, W1).reshape(V * Cin, V * H)
    b1 = jnp.tile(params["b_msg3d"], (V,)).reshape(1, V * H)

    A6, W2 = params["A6"], params["w_stgcn"]                 # (1,6,6), (1,H,H)
    M2 = jnp.einsum("kvw,kio->wivo", A6, W2).reshape(6 * H, 6 * H)
    b2 = jnp.tile(params["b_stgcn"], (6,)).reshape(1, 6 * H)
    return M1.astype(jnp.bfloat16), b1, M2.astype(jnp.bfloat16), b2


def gesture_extractor_forward(params, x, *, do_cluster=True, relu_between=False):
    """x: (N, T, V=21, C) keypoints, same input convention as the PyTorch module."""
    N, T, V, C = x.shape
    H = params["w_msg3d"].shape[-1]
    # lens = (x != 0.0).all(-1).all(-1).sum(1)
    lens = jnp.sum(jnp.all(x != 0.0, axis=(-1, -2)), axis=1).astype(jnp.int32)
    # TODO(synk): lens is consumed inside MSG3D/STGCN for sequence masking; their
    #             source is unavailable so it is computed but not used.
    del relu_between  # no-op: the stand-in GCNs already end in ReLU (see kernel).

    m1, b1, m2, b2 = _fuse_weights(params, do_cluster)

    NT = N * T
    x_flat = x.reshape(NT, V * C).astype(jnp.bfloat16)       # bf16 feed for the MXU
    tb = min(512, _round_up(NT, 8))                          # frames per grid step
    nt_pad = _round_up(NT, tb)
    if nt_pad != NT:
        x_flat = jnp.pad(x_flat, ((0, nt_pad - NT), (0, 0)))

    out_w = (6 if do_cluster else V) * H
    kernel = functools.partial(_gesture_kernel, hid=H, ranges=CLUSTER_RANGES,
                               do_cluster=do_cluster)
    feat = pl.pallas_call(
        kernel,
        out_shape=jax.ShapeDtypeStruct((nt_pad, out_w), jnp.float32),
        grid_spec=pltpu.PrefetchScalarGridSpec(
            num_scalar_prefetch=0,
            grid=(nt_pad // tb,),
            in_specs=[
                pl.BlockSpec((tb, V * C), lambda i: (i, 0)),
                pl.BlockSpec((V * C, V * H), lambda i: (0, 0)),
                pl.BlockSpec((1, V * H), lambda i: (0, 0)),
                pl.BlockSpec((6 * H, 6 * H), lambda i: (0, 0)),
                pl.BlockSpec((1, 6 * H), lambda i: (0, 0)),
            ],
            out_specs=pl.BlockSpec((tb, out_w), lambda i: (i, 0)),
        ),
        compiler_params=pltpu.CompilerParams(dimension_semantics=("parallel",)),
    )(x_flat, m1, b1, m2, b2)

    feat = feat[:NT]                                         # drop frame padding
    Vp = 6 if do_cluster else V
    # Back to PyTorch convention: (N, C=H, T, V', 1); dropout is eval identity.
    out = feat.reshape(N, T, Vp, H).transpose(0, 3, 1, 2)[..., None]
    return out, lens


# --------------------------------------------------------------------------
# Pure-JAX/numpy reference (f32) for correctness checking
# --------------------------------------------------------------------------
def _reference_forward(params, x, do_cluster=True):
    N, T, V, C = x.shape
    A21 = np.asarray(params["A21"]); W1 = np.asarray(params["w_msg3d"])
    b1 = np.asarray(params["b_msg3d"])
    A6 = np.asarray(params["A6"]); W2 = np.asarray(params["w_stgcn"])
    b2 = np.asarray(params["b_stgcn"])
    xf = np.asarray(x, np.float32).reshape(N * T, V, C)
    h = np.maximum(np.einsum("kvw,twi,kio->tvo", A21, xf, W1) + b1, 0.0)
    if not do_cluster:
        feat, Vp = h, V
    else:
        pooled = np.stack([h[:, list(g), :].max(axis=1) for g in CLUSTERS_21], 1)
        z = np.maximum(np.einsum("kvw,twi,kio->tvo", A6, pooled, W2) + b2, 0.0)
        feat, Vp = z, 6
    return feat.reshape(N, T, Vp, -1).transpose(0, 3, 1, 2)[..., None]


# --------------------------------------------------------------------------
if __name__ == "__main__":
    key = jax.random.PRNGKey(0)
    N, T, V, C = 2, 16, 21, 3              # small shapes consistent with the module
    num_gcn_scales = 4
    hid_dim = [32]

    kx, kp = jax.random.split(key)
    x = jax.random.normal(kx, (N, T, V, C), jnp.float32)
    x = x.at[1, T - 4:].set(0.0)           # make `lens` differ per sample

    params = init_params(kp, num_gcn_scales, C, hid_dim)
    fwd = jax.jit(functools.partial(gesture_extractor_forward,
                                    do_cluster=True, relu_between=False))
    out, lens = fwd(params, x)
    jax.block_until_ready((out, lens))

    assert out.shape == (N, hid_dim[-1], T, 6, 1), out.shape
    assert lens.shape == (N,), lens.shape

    ref = _reference_forward(params, x, do_cluster=True)
    np.testing.assert_allclose(np.asarray(out), ref, rtol=1e-1, atol=1e-1)
    np.testing.assert_array_equal(np.asarray(lens), np.array([T, T - 4]))

    print("KERNEL_OK")
</pallas_src>

<mosaic_0001>
module attributes {stable_mosaic.version = 11 : i64} {
  func.func @_gesture_kernel(%arg0: i32, %arg1: memref<32x63xbf16, #tpu.memory_space<vmem>>, %arg2: memref<63x672xbf16, #tpu.memory_space<vmem>>, %arg3: memref<1x672xf32, #tpu.memory_space<vmem>>, %arg4: memref<192x192xbf16, #tpu.memory_space<vmem>>, %arg5: memref<1x192xf32, #tpu.memory_space<vmem>>, %arg6: memref<32x192xf32, #tpu.memory_space<vmem>>) attributes {dimension_semantics = [#tpu.dimension_semantics<parallel>], iteration_bounds = array<i64: 1>, scalar_prefetch = 0 : i64, scratch_operands = 0 : i64, tpu.core_type = #tpu.core_type<tc>, window_params = [{transform_indices = @transform_0, window_bounds = array<i64: 32, 63>}, {pipeline_mode = #tpu.pipeline_mode<synchronous>, transform_indices = @transform_1, window_bounds = array<i64: 63, 672>}, {pipeline_mode = #tpu.pipeline_mode<synchronous>, transform_indices = @transform_2, window_bounds = array<i64: 1, 672>}, {pipeline_mode = #tpu.pipeline_mode<synchronous>, transform_indices = @transform_3, window_bounds = array<i64: 192, 192>}, {pipeline_mode = #tpu.pipeline_mode<synchronous>, transform_indices = @transform_4, window_bounds = array<i64: 1, 192>}, {transform_indices = @transform_5, window_bounds = array<i64: 32, 192>}]} {
    %c0 = arith.constant 0 : index
    %c0_0 = arith.constant 0 : index
    %0 = vector.load %arg1[%c0, %c0_0] : memref<32x63xbf16, #tpu.memory_space<vmem>>, vector<32x63xbf16>
    %c0_1 = arith.constant 0 : index
    %c0_2 = arith.constant 0 : index
    %1 = vector.load %arg2[%c0_1, %c0_2] : memref<63x672xbf16, #tpu.memory_space<vmem>>, vector<63x672xbf16>
    %cst = arith.constant dense<0.000000e+00> : vector<32x672xf32>
    %2 = tpu.matmul %0, %1, %cst {dimension_numbers = #tpu.dot_dimension_numbers<[1], [0], [0], [1], [0, 0, 1, 1], [], []>} : vector<32x63xbf16>, vector<63x672xbf16>, vector<32x672xf32> -> vector<32x672xf32>
    %c0_3 = arith.constant 0 : index
    %c0_4 = arith.constant 0 : index
    %3 = vector.load %arg3[%c0_3, %c0_4] : memref<1x672xf32, #tpu.memory_space<vmem>>, vector<1x672xf32>
    %4 = vector.broadcast %3 : vector<1x672xf32> to vector<32x672xf32>
    %5 = arith.addf %2, %4 : vector<32x672xf32>
    %cst_5 = arith.constant 0.000000e+00 : f32
    %6 = vector.broadcast %cst_5 : f32 to vector<32x672xf32>
    %7 = arith.maximumf %5, %6 : vector<32x672xf32>
    %8 = vector.extract_strided_slice %7 {offsets = [0, 0], sizes = [32, 32], strides = [1, 1]} : vector<32x672xf32> to vector<32x32xf32>
    %9 = vector.extract_strided_slice %7 {offsets = [0, 32], sizes = [32, 32], strides = [1, 1]} : vector<32x672xf32> to vector<32x32xf32>
    %10 = arith.maximumf %8, %9 : vector<32x32xf32>
    %11 = vector.extract_strided_slice %7 {offsets = [0, 64], sizes = [32, 32], strides = [1, 1]} : vector<32x672xf32> to vector<32x32xf32>
    %12 = arith.maximumf %10, %11 : vector<32x32xf32>
    %13 = vector.extract_strided_slice %7 {offsets = [0, 96], sizes = [32, 32], strides = [1, 1]} : vector<32x672xf32> to vector<32x32xf32>
    %14 = arith.maximumf %12, %13 : vector<32x32xf32>
    %15 = vector.extract_strided_slice %7 {offsets = [0, 128], sizes = [32, 32], strides = [1, 1]} : vector<32x672xf32> to vector<32x32xf32>
    %16 = arith.maximumf %14, %15 : vector<32x32xf32>
    %17 = vector.extract_strided_slice %7 {offsets = [0, 160], sizes = [32, 32], strides = [1, 1]} : vector<32x672xf32> to vector<32x32xf32>
    %18 = arith.maximumf %16, %17 : vector<32x32xf32>
    %19 = vector.extract_strided_slice %7 {offsets = [0, 192], sizes = [32, 32], strides = [1, 1]} : vector<32x672xf32> to vector<32x32xf32>
    %20 = vector.extract_strided_slice %7 {offsets = [0, 224], sizes = [32, 32], strides = [1, 1]} : vector<32x672xf32> to vector<32x32xf32>
    %21 = arith.maximumf %19, %20 : vector<32x32xf32>
    %22 = vector.extract_strided_slice %7 {offsets = [0, 256], sizes = [32, 32], strides = [1, 1]} : vector<32x672xf32> to vector<32x32xf32>
    %23 = arith.maximumf %21, %22 : vector<32x32xf32>
    %24 = vector.extract_strided_slice %7 {offsets = [0, 288], sizes = [32, 32], strides = [1, 1]} : vector<32x672xf32> to vector<32x32xf32>
    %25 = vector.extract_strided_slice %7 {offsets = [0, 320], sizes = [32, 32], strides = [1, 1]} : vector<32x672xf32> to vector<32x32xf32>
    %26 = arith.maximumf %24, %25 : vector<32x32xf32>
    %27 = vector.extract_strided_slice %7 {offsets = [0, 352], sizes = [32, 32], strides = [1, 1]} : vector<32x672xf32> to vector<32x32xf32>
    %28 = arith.maximumf %26, %27 : vector<32x32xf32>
    %29 = vector.extract_strided_slice %7 {offsets = [0, 384], sizes = [32, 32], strides = [1, 1]} : vector<32x672xf32> to vector<32x32xf32>
    %30 = vector.extract_strided_slice %7 {offsets = [0, 416], sizes = [32, 32], strides = [1, 1]} : vector<32x672xf32> to vector<32x32xf32>
    %31 = arith.maximumf %29, %30 : vector<32x32xf32>
    %32 = vector.extract_strided_slice %7 {offsets = [0, 448], sizes = [32, 32], strides = [1, 1]} : vector<32x672xf32> to vector<32x32xf32>
    %33 = arith.maximumf %31, %32 : vector<32x32xf32>
    %34 = vector.extract_strided_slice %7 {offsets = [0, 480], sizes = [32, 32], strides = [1, 1]} : vector<32x672xf32> to vector<32x32xf32>
    %35 = vector.extract_strided_slice %7 {offsets = [0, 512], sizes = [32, 32], strides = [1, 1]} : vector<32x672xf32> to vector<32x32xf32>
    %36 = arith.maximumf %34, %35 : vector<32x32xf32>
    %37 = vector.extract_strided_slice %7 {offsets = [0, 544], sizes = [32, 32], strides = [1, 1]} : vector<32x672xf32> to vector<32x32xf32>
    %38 = arith.maximumf %36, %37 : vector<32x32xf32>
    %39 = vector.extract_strided_slice %7 {offsets = [0, 576], sizes = [32, 32], strides = [1, 1]} : vector<32x672xf32> to vector<32x32xf32>
    %40 = vector.extract_strided_slice %7 {offsets = [0, 608], sizes = [32, 32], strides = [1, 1]} : vector<32x672xf32> to vector<32x32xf32>
    %41 = arith.maximumf %39, %40 : vector<32x32xf32>
    %42 = vector.extract_strided_slice %7 {offsets = [0, 640], sizes = [32, 32], strides = [1, 1]} : vector<32x672xf32> to vector<32x32xf32>
    %43 = arith.maximumf %41, %42 : vector<32x32xf32>
    %44 = tpu.concatenate %18, %23, %28, %33, %38, %43 in 1 : vector<32x32xf32>, vector<32x32xf32>, vector<32x32xf32>, vector<32x32xf32>, vector<32x32xf32>, vector<32x32xf32> -> vector<32x192xf32>
    %45 = arith.truncf %44 : vector<32x192xf32> to vector<32x192xbf16>
    %c0_6 = arith.constant 0 : index
    %c0_7 = arith.constant 0 : index
    %46 = vector.load %arg4[%c0_6, %c0_7] : memref<192x192xbf16, #tpu.memory_space<vmem>>, vector<192x192xbf16>
    %cst_8 = arith.constant dense<0.000000e+00> : vector<32x192xf32>
    %47 = tpu.matmul %45, %46, %cst_8 {dimension_numbers = #tpu.dot_dimension_numbers<[1], [0], [0], [1], [0, 0, 1, 1], [], []>} : vector<32x192xbf16>, vector<192x192xbf16>, vector<32x192xf32> -> vector<32x192xf32>
    %c0_9 = arith.constant 0 : index
    %c0_10 = arith.constant 0 : index
    %48 = vector.load %arg5[%c0_9, %c0_10] : memref<1x192xf32, #tpu.memory_space<vmem>>, vector<1x192xf32>
    %49 = vector.broadcast %48 : vector<1x192xf32> to vector<32x192xf32>
    %50 = arith.addf %47, %49 : vector<32x192xf32>
    %cst_11 = arith.constant 0.000000e+00 : f32
    %51 = vector.broadcast %cst_11 : f32 to vector<32x192xf32>
    %52 = arith.maximumf %50, %51 : vector<32x192xf32>
    %c0_12 = arith.constant 0 : index
    %c0_13 = arith.constant 0 : index
    %53 = vector.load %arg6[%c0_12, %c0_13] : memref<32x192xf32, #tpu.memory_space<vmem>>, vector<32x192xf32>
    tpu.vector_store %arg6[%c0_12, %c0_13], %52 {strides = array<i32>} : memref<32x192xf32, #tpu.memory_space<vmem>>, vector<32x192xf32>,
    return
  }
  func.func @transform_0(%arg0: i32) -> (i32, i32) {
    %c0_i32 = arith.constant 0 : i32
    %c0_i32_0 = arith.constant 0 : i32
    return %arg0, %c0_i32 : i32, i32
  }
  func.func @transform_1(%arg0: i32) -> (i32, i32) {
    %c0_i32 = arith.constant 0 : i32
    %c0_i32_0 = arith.constant 0 : i32
    %c0_i32_1 = arith.constant 0 : i32
    return %c0_i32, %c0_i32_0 : i32, i32
  }
  func.func @transform_2(%arg0: i32) -> (i32, i32) {
    %c0_i32 = arith.constant 0 : i32
    %c0_i32_0 = arith.constant 0 : i32
    %c0_i32_1 = arith.constant 0 : i32
    return %c0_i32, %c0_i32_0 : i32, i32
  }
  func.func @transform_3(%arg0: i32) -> (i32, i32) {
    %c0_i32 = arith.constant 0 : i32
    %c0_i32_0 = arith.constant 0 : i32
    %c0_i32_1 = arith.constant 0 : i32
    return %c0_i32, %c0_i32_0 : i32, i32
  }
  func.func @transform_4(%arg0: i32) -> (i32, i32) {
    %c0_i32 = arith.constant 0 : i32
    %c0_i32_0 = arith.constant 0 : i32
    %c0_i32_1 = arith.constant 0 : i32
    return %c0_i32, %c0_i32_0 : i32, i32
  }
  func.func @transform_5(%arg0: i32) -> (i32, i32) {
    %c0_i32 = arith.constant 0 : i32
    %c0_i32_0 = arith.constant 0 : i32
    return %arg0, %c0_i32 : i32, i32
  }
}

</mosaic_0001>

<llo_original>
// kernel: tile.13
$region0: #{tile.13}
  #allocation0 [shape = 's32[1]{0}', space=sflag, size = 0x4, scoped, tag = 'scoped memory for tile.13']
  %s0 = inlined_call_operand.vmem [shape: f32[32], index: 0, kind: input, shape index: {}]
  %s1 = inlined_call_operand.vmem [shape: f32[21,32], index: 1, kind: output, shape index: {}]
  // Predicated region
  $region2: #{tile.13} parent=0 // pred_check
    _
  $region3: #{tile.13} parent=0 // pred_check_branch
    %3 = sbr.rel (0) target = $region5
  $region4: #{tile.13} parent=0 // pred_region
    _
  $region5: #{tile.13} parent=0 // pred_fallthru
    _
  %v4 = vld [vmem:[%s0] ss:$0 sm:$0xff]
  %5 = vst [vmem:[%s1] sm:$0xff] %v4
  %s6 = scalar_lea.vmem %s1, 8
  %7 = vst [vmem:[%s6] sm:$0xff] %v4
  %s8 = scalar_lea.vmem %s1, 16
  %9 = vst [vmem:[%s8] sm:$0xff] %v4

// kernel: tile.14
$region0: #{tile.14}
  %s0 = inlined_call_operand.vmem [shape: f32[21,32], index: 0, kind: input, shape index: {}]
  %s1 = inlined_call_operand.vmem [shape: f32[1,672], index: 1, kind: output, shape index: {}]
  $region1: #{tile.14} parent=0
    #allocation0 [shape = 'u8[24576]{0}', space=vmem, size = 0x6000, scoped, tag = 'scoped mem for output reshape']
    %v2 = vld [vmem:[%s0] ss:$4 sm:$0x3f]
    %vm3 = vcmask 261120
    %4 = vst.msk [vmem:[#allocation0] ss:$8 sm:$0xf] %vm3, %v2
    %5 = vst.msk [vmem:[#allocation0] ss:$8 sm:$0x30] %vm3, %v2
    %s6 = scalar_lea.vmem %s0, 3
    %v7 = vld [vmem:[%s6] ss:$4 sm:$0x1f]
    %8 = vrot.lane.b32.xlu0 %v7, 96
    %v9 = vpop.permute.xlu0 %8
    %vm10 = vcmask 1048320
    %11 = vst.msk [vmem:[#allocation0] ss:$8 sm:$0xf] %vm10, %v9
    %s12 = scalar_lea.vmem [#allocation0], 28
    %13 = vst.msk [vmem:[%s12] sm:$0x10] %vm10, %v9
    %s14 = scalar_lea.vmem %s0, 2
    %v15 = vld [vmem:[%s14] ss:$4 sm:$0x1f]
    %16 = vrot.lane.b32.xlu0 %v15, 64
    %v17 = vpop.permute.xlu0 %16
    %vm18 = vcmask 785920
    %19 = vst.msk [vmem:[#allocation0] ss:$8 sm:$0xf] %vm18, %v17
    %s20 = scalar_lea.vmem [#allocation0], 28
    %21 = vst.msk [vmem:[%s20] sm:$0x10] %vm18, %v17
    %s22 = scalar_lea.vmem %s0, 1
    %v23 = vld [vmem:[%s22] ss:$4 sm:$0x1f]
    %24 = vrot.lane.b32.xlu0 %v23, 32
    %v25 = vpop.permute.xlu0 %24
    %vm26 = vcmask 523520
    %27 = vst.msk [vmem:[#allocation0] ss:$8 sm:$0xf] %vm26, %v25
    %s28 = scalar_lea.vmem [#allocation0], 28
    %29 = vst.msk [vmem:[%s28] sm:$0x10] %vm26, %v25
    %s31 = ssub.s32 2, 1
    %v32 = vld [vmem:[#allocation0] sm:%s31]
    %s34 = ssub.s32 2, 1
    %35 = vst [vmem:[%s1] sm:%s34] %v32
    %s36 = scalar_lea.vmem [#allocation0], 8
    %v37 = vld [vmem:[%s36] sm:%s31]
    %s39 = ssub.s32 2, 1
    %s40 = scalar_lea.vmem %s1, 1
    %41 = vst [vmem:[%s40] sm:%s39] %v37
    %s42 = scalar_lea.vmem [#allocation0], 16
    %v43 = vld [vmem:[%s42] sm:%s31]
    %s45 = ssub.s32 2, 1
    %s46 = scalar_lea.vmem %s1, 2
    %47 = vst [vmem:[%s46] sm:%s45] %v43
    %s48 = scalar_lea.vmem [#allocation0], 24
    %v49 = vld [vmem:[%s48] sm:%s31]
    %s51 = ssub.s32 2, 1
    %s52 = scalar_lea.vmem %s1, 3
    %53 = vst [vmem:[%s52] sm:%s51] %v49
    %s54 = scalar_lea.vmem [#allocation0], 32
    %v55 = vld [vmem:[%s54] sm:%s31]
    %s57 = ssub.s32 2, 1
    %s58 = scalar_lea.vmem %s1, 4
    %59 = vst [vmem:[%s58] sm:%s57] %v55
    %s60 = scalar_lea.vmem [#allocation0], 40
    %v61 = vld [vmem:[%s60] sm:%s31]
    %s63 = ssub.s32 2, 1
    %s64 = scalar_lea.vmem %s1, 5
    %65 = vst [vmem:[%s64] sm:%s63] %v61

// kernel: tile.18
$region0: #{tile.18}
  #allocation0 [shape = 's32[1]{0}', space=sflag, size = 0x4, scoped, tag = 'scoped memory for tile.18']
  %s0 = inlined_call_operand.vmem [shape: f32[32], index: 0, kind: input, shape index: {}]
  %s1 = inlined_call_operand.vmem [shape: f32[6,32], index: 1, kind: output, shape index: {}]
  // Predicated region
  $region2: #{tile.18} parent=0 // pred_check
    _
  $region3: #{tile.18} parent=0 // pred_check_branch
    %3 = sbr.rel (0) target = $region5
  $region4: #{tile.18} parent=0 // pred_region
    _
  $region5: #{tile.18} parent=0 // pred_fallthru
    _
  %v4 = vld [vmem:[%s0] ss:$0 sm:$0xff]
  %5 = vst [vmem:[%s1] sm:$0xff] %v4

// kernel: tile.19
$region0: #{tile.19}
  %s0 = inlined_call_operand.vmem [shape: f32[6,32], index: 0, kind: input, shape index: {}]
  %s1 = inlined_call_operand.vmem [shape: f32[1,192], index: 1, kind: output, shape index: {}]
  $region1: #{tile.19} parent=0
    #allocation0 [shape = 'u8[8192]{0}', space=vmem, size = 0x2000, scoped, tag = 'scoped mem for output reshape']
    %s2 = smov 3
    %v3 = vld [vmem:[%s0] ss:$4 sm:%s2]
    %vm4 = vcmask 261120
    %5 = vst.msk [vmem:[#allocation0] ss:$8 sm:$0x3] %vm4, %v3
    %s6 = scalar_lea.vmem %s0, 3
    %v7 = vld [vmem:[%s6] sm:$0x1]
    %8 = vrot.lane.b32.xlu0 %v7, 96
    %v9 = vpop.permute.xlu0 %8
    %vm10 = vcmask 1048320
    %11 = vst.msk [vmem:[#allocation0] sm:$0x1] %vm10, %v9
    %s12 = scalar_lea.vmem %s0, 2
    %v13 = vld [vmem:[%s12] sm:$0x1]
    %14 = vrot.lane.b32.xlu0 %v13, 64
    %v15 = vpop.permute.xlu0 %14
    %vm16 = vcmask 785920
    %17 = vst.msk [vmem:[#allocation0] sm:$0x1] %vm16, %v15
    %s18 = scalar_lea.vmem %s0, 1
    %s19 = smov 3
    %v20 = vld [vmem:[%s18] ss:$4 sm:%s19]
    %21 = vrot.lane.b32.xlu0 %v20, 32
    %v22 = vpop.permute.xlu0 %21
    %vm23 = vcmask 523520
    %24 = vst.msk [vmem:[#allocation0] ss:$8 sm:$0x3] %vm23, %v22
    %s26 = ssub.s32 2, 1
    %v27 = vld [vmem:[#allocation0] sm:%s26]
    %s29 = ssub.s32 2, 1
    %30 = vst [vmem:[%s1] sm:%s29] %v27
    %s31 = scalar_lea.vmem [#allocation0], 8
    %v32 = vld [vmem:[%s31] sm:%s26]
    %s34 = ssub.s32 2, 1
    %s35 = scalar_lea.vmem %s1, 1
    %36 = vst [vmem:[%s35] sm:%s34] %v32

// kernel: gesture_extractor_forward.1
$region0: #{gesture_extractor_forward.1}
  #allocation0 [shape = 'u32[]', space=smem, size = 0x4, offset = 0x4, fixed_abs, tag = 'smem constant byte address 0x4 - core index']
  #allocation1 [shape = 'u32[72,128]{1,0:T(1,128)}', space=vmem, size = 0x9000, scoped, tag = 'internal scratch']
  %s0 = inlined_call_operand.vmem [shape: bf16[32,63], index: 0, kind: input, shape index: {}]
  %s1 = inlined_call_operand.vmem [shape: bf16[63,672], index: 1, kind: input, shape index: {}]
  %s2 = inlined_call_operand.vmem [shape: f32[1,672], index: 2, kind: input, shape index: {}]
  %s3 = inlined_call_operand.vmem [shape: bf16[192,192], index: 3, kind: input, shape index: {}]
  %s4 = inlined_call_operand.vmem [shape: f32[1,192], index: 4, kind: input, shape index: {}]
  %s5 = inlined_call_operand.vmem [shape: f32[32,192], index: 5, kind: output, shape index: {}]
  %s6 = sld [smem:[#allocation0]]
  $region30: #{gesture_extractor_forward.1} parent=0
    _
  %s8 = ssub.s32 1, %s6
  %s9 = scalar_select 0, %s8, %s6
  // Predicated region
  $region2: #{gesture_extractor_forward.1} parent=0 // pred_check
    _
  $region3: #{gesture_extractor_forward.1} parent=0 // pred_check_branch
    %11 = sbr.rel (0) target = $region5
  $region4: #{gesture_extractor_forward.1} parent=0 // pred_region
    _
  $region5: #{gesture_extractor_forward.1} parent=0 // pred_fallthru
    _
  // Predicated region
  $region6: #{gesture_extractor_forward.1} parent=0 // pred_check
    _
  $region7: #{gesture_extractor_forward.1} parent=0 // pred_check_branch
    %13 = sbr.rel (0) target = $region9
  $region8: #{gesture_extractor_forward.1} parent=0 // pred_region
    _
  $region9: #{gesture_extractor_forward.1} parent=0 // pred_fallthru
    _
  // Predicated region
  $region10: #{gesture_extractor_forward.1} parent=0 // pred_check
    _
  $region11: #{gesture_extractor_forward.1} parent=0 // pred_check_branch
    %15 = sbr.rel (0) target = $region13
  $region12: #{gesture_extractor_forward.1} parent=0 // pred_region
    _
  $region13: #{gesture_extractor_forward.1} parent=0 // pred_fallthru
    _
  // Predicated region
  $region14: #{gesture_extractor_forward.1} parent=0 // pred_check
    _
  $region15: #{gesture_extractor_forward.1} parent=0 // pred_check_branch
    %17 = sbr.rel (0) target = $region17
  $region16: #{gesture_extractor_forward.1} parent=0 // pred_region
    _
  $region17: #{gesture_extractor_forward.1} parent=0 // pred_fallthru
    _
  // Predicated region
  $region18: #{gesture_extractor_forward.1} parent=0 // pred_check
    _
  $region19: #{gesture_extractor_forward.1} parent=0 // pred_check_branch
    %19 = sbr.rel (0) target = $region21
  $region20: #{gesture_extractor_forward.1} parent=0 // pred_region
    _
  $region21: #{gesture_extractor_forward.1} parent=0 // pred_fallthru
    _
  %v21 = vld [vmem:[%s0] sm:$0xf]
  %v22 = vld [vmem:[%s0 + $0x4] sm:$0xf]
  %v23 = vld [vmem:[%s0 + $0x8] sm:$0xf]
  %v24 = vld [vmem:[%s0 + $0xc] sm:$0xf]
  %v25 = vld [vmem:[%s1] sm:$0xff]
  %v26 = vld [vmem:[%s1 + $0x8] sm:$0xff]
  %v27 = vld [vmem:[%s1 + $0x10] sm:$0xff]
  %v28 = vld [vmem:[%s1 + $0x18] sm:$0xff]
  %v29 = vld [vmem:[%s1 + $0x20] sm:$0xff]
  %v30 = vld [vmem:[%s1 + $0x28] sm:$0xff]
  %v31 = vld [vmem:[%s1 + $0x30] sm:$0xff]
  %v32 = vld [vmem:[%s1 + $0x38] sm:$0xff]
  %v33 = vld [vmem:[%s1 + $0x40] sm:$0xff]
  %v34 = vld [vmem:[%s1 + $0x48] sm:$0xff]
  %v35 = vld [vmem:[%s1 + $0x50] sm:$0xff]
  %v36 = vld [vmem:[%s1 + $0x58] sm:$0xff]
  %v37 = vld [vmem:[%s1 + $0x60] sm:$0xff]
  %v38 = vld [vmem:[%s1 + $0x68] sm:$0xff]
  %v39 = vld [vmem:[%s1 + $0x70] sm:$0xff]
  %v40 = vld [vmem:[%s1 + $0x78] sm:$0xff]
  %v41 = vld [vmem:[%s1 + $0x80] sm:$0xff]
  %v42 = vld [vmem:[%s1 + $0x88] sm:$0xff]
  %v43 = vld [vmem:[%s1 + $0x90] sm:$0xff]
  %v44 = vld [vmem:[%s1 + $0x98] sm:$0xff]
  %v45 = vld [vmem:[%s1 + $0xa0] sm:$0xff]
  %v46 = vld [vmem:[%s1 + $0xa8] sm:$0xff]
  %v47 = vld [vmem:[%s1 + $0xb0] sm:$0xff]
  %v48 = vld [vmem:[%s1 + $0xb8] sm:$0xff]
  %v49 = vld [vmem:[%s2] sm:$0x3f]
  %v51 = vperm.slane %v49, 0
  %v52 = vperm.slane %v49, 1
  %v53 = vperm.slane %v49, 2
  %v54 = vperm.slane %v49, 3
  %v55 = vperm.slane %v49, 4
  %v56 = vperm.slane %v49, 5
  %v67 = vunpack.c.l.b16 %v21
  %v68 = vunpack.c.l.b16 %v22
  %v69 = vunpack.c.l.b16 %v23
  %v70 = vunpack.c.l.b16 %v24
  %v71 = vpack.c.b16 %v68, %v67
  %v72 = vpack.c.b16 %v70, %v69
  %v97 = vunpack.c.l.b16 %v25
  %v98 = vunpack.c.h.b16 %v25
  %v99 = vunpack.c.l.b16 %v26
  %v100 = vunpack.c.h.b16 %v26
  %v101 = vunpack.c.l.b16 %v27
  %v102 = vunpack.c.h.b16 %v27
  %v103 = vunpack.c.l.b16 %v28
  %v104 = vunpack.c.h.b16 %v28
  %v105 = vunpack.c.l.b16 %v29
  %v106 = vunpack.c.h.b16 %v29
  %v107 = vunpack.c.l.b16 %v30
  %v108 = vunpack.c.h.b16 %v30
  %v109 = vunpack.c.l.b16 %v31
  %v110 = vunpack.c.h.b16 %v31
  %v111 = vunpack.c.l.b16 %v32
  %v112 = vunpack.c.h.b16 %v32
  %v113 = vunpack.c.l.b16 %v33
  %v114 = vunpack.c.h.b16 %v33
  %v115 = vunpack.c.l.b16 %v34
  %v116 = vunpack.c.h.b16 %v34
  %v117 = vunpack.c.l.b16 %v35
  %v118 = vunpack.c.h.b16 %v35
  %v119 = vunpack.c.l.b16 %v36
  %v120 = vunpack.c.h.b16 %v36
  %v121 = vunpack.c.l.b16 %v37
  %v122 = vunpack.c.h.b16 %v37
  %v123 = vunpack.c.l.b16 %v38
  %v124 = vunpack.c.h.b16 %v38
  %v125 = vunpack.c.l.b16 %v39
  %v126 = vunpack.c.h.b16 %v39
  %v127 = vunpack.c.l.b16 %v40
  %v128 = vunpack.c.h.b16 %v40
  %v129 = vunpack.c.l.b16 %v41
  %v130 = vunpack.c.h.b16 %v41
  %v131 = vunpack.c.l.b16 %v42
  %v132 = vunpack.c.h.b16 %v42
  %v133 = vunpack.c.l.b16 %v43
  %v134 = vunpack.c.h.b16 %v43
  %v135 = vunpack.c.l.b16 %v44
  %v136 = vunpack.c.h.b16 %v44
  %v137 = vunpack.c.l.b16 %v45
  %v138 = vunpack.c.h.b16 %v45
  %v139 = vunpack.c.l.b16 %v46
  %v140 = vunpack.c.h.b16 %v46
  %v141 = vunpack.c.l.b16 %v47
  %v142 = vunpack.c.h.b16 %v47
  %v143 = vunpack.c.l.b16 %v48
  %v144 = vunpack.c.h.b16 %v48
  %v145 = vpack.c.b16 %v103, %v97
  %v146 = vpack.c.b16 %v104, %v98
  %v147 = vpack.c.b16 %v105, %v99
  %v148 = vpack.c.b16 %v106, %v100
  %v149 = vpack.c.b16 %v107, %v101
  %v150 = vpack.c.b16 %v108, %v102
  %v151 = vpack.c.b16 %v115, %v109
  %v152 = vpack.c.b16 %v116, %v110
  %v153 = vpack.c.b16 %v117, %v111
  %v154 = vpack.c.b16 %v118, %v112
  %v155 = vpack.c.b16 %v119, %v113
  %v156 = vpack.c.b16 %v120, %v114
  %v157 = vpack.c.b16 %v127, %v121
  %v158 = vpack.c.b16 %v128, %v122
  %v159 = vpack.c.b16 %v129, %v123
  %v160 = vpack.c.b16 %v130, %v124
  %v161 = vpack.c.b16 %v131, %v125
  %v162 = vpack.c.b16 %v132, %v126
  %v163 = vpack.c.b16 %v139, %v133
  %v164 = vpack.c.b16 %v140, %v134
  %v165 = vpack.c.b16 %v141, %v135
  %v166 = vpack.c.b16 %v142, %v136
  %v167 = vpack.c.b16 %v143, %v137
  %v168 = vpack.c.b16 %v144, %v138
  %vm187 = vcmask 515072
  %v189 = vsel %vm187, %v71, 0
  %v192 = vsel %vm187, %v72, 0
  %vm194 = vcmask 1046528
  %vm195 = vcmask 1047552
  %v196 = vsel %vm194, 4294967295, 65535
  %v197 = vsel %vm195, %v196, 0
  %v199 = vand.u32 %v163, %v197
  %v202 = vand.u32 %v164, %v197
  %v205 = vand.u32 %v165, %v197
  %v208 = vand.u32 %v166, %v197
  %v211 = vand.u32 %v167, %v197
  %v214 = vand.u32 %v168, %v197
  %216 = vmatpush.bf16.msra.mxu0 0
  %217 = vmatpush.bf16.msra.mxu0 0
  %218 = vmatpush.bf16.msra.mxu0 0
  %219 = vmatpush.bf16.msra.mxu0 0
  %220 = vmatpush.bf16.msra.mxu0 %v199
  %221 = vmatpush.bf16.msra.mxu0 %v157
  %222 = vmatpush.bf16.msra.mxu0 %v151
  %223 = vmatpush.bf16.msra.mxu0 %v145
  %224 = vmatmul.bf16.gmra.mxu0 %v189
  %v225 = vpop.f32.mrf.mxu0
  %v226 = vadd.f32 %v51, %v225
  %v227 = vpop.f32.mrf.mxu0
  %v228 = vadd.f32 %v51, %v227
  %229 = vmatmul.bf16.gmra.mxu0 %v192
  %v230 = vpop.f32.mrf.mxu0
  %v231 = vadd.f32 %v51, %v230
  %v232 = vpop.f32.mrf.mxu0
  %v233 = vadd.f32 %v51, %v232
  %234 = vdwg.mxu0
  %235 = vmatpush.bf16.msra.mxu0 0
  %236 = vmatpush.bf16.msra.mxu0 0
  %237 = vmatpush.bf16.msra.mxu0 0
  %238 = vmatpush.bf16.msra.mxu0 0
  %239 = vmatpush.bf16.msra.mxu0 %v202
  %240 = vmatpush.bf16.msra.mxu0 %v158
  %241 = vmatpush.bf16.msra.mxu0 %v152
  %242 = vmatpush.bf16.msra.mxu0 %v146
  %243 = vmatmul.bf16.gmra.mxu0 %v189
  %v244 = vpop.f32.mrf.mxu0
  %v245 = vadd.f32 %v52, %v244
  %v246 = vpop.f32.mrf.mxu0
  %v247 = vadd.f32 %v52, %v246
  %248 = vmatmul.bf16.gmra.mxu0 %v192
  %v249 = vpop.f32.mrf.mxu0
  %v250 = vadd.f32 %v52, %v249
  %v251 = vpop.f32.mrf.mxu0
  %v252 = vadd.f32 %v52, %v251
  %253 = vdwg.mxu0
  %254 = vmatpush.bf16.msra.mxu0 0
  %255 = vmatpush.bf16.msra.mxu0 0
  %256 = vmatpush.bf16.msra.mxu0 0
  %257 = vmatpush.bf16.msra.mxu0 0
  %258 = vmatpush.bf16.msra.mxu0 %v205
  %259 = vmatpush.bf16.msra.mxu0 %v159
  %260 = vmatpush.bf16.msra.mxu0 %v153
  %261 = vmatpush.bf16.msra.mxu0 %v147
  %262 = vmatmul.bf16.gmra.mxu0 %v189
  %v263 = vpop.f32.mrf.mxu0
  %v264 = vadd.f32 %v53, %v263
  %v265 = vpop.f32.mrf.mxu0
  %v266 = vadd.f32 %v53, %v265
  %267 = vmatmul.bf16.gmra.mxu0 %v192
  %v268 = vpop.f32.mrf.mxu0
  %v269 = vadd.f32 %v53, %v268
  %v270 = vpop.f32.mrf.mxu0
  %v271 = vadd.f32 %v53, %v270
  %272 = vdwg.mxu0
  %273 = vmatpush.bf16.msra.mxu0 0
  %274 = vmatpush.bf16.msra.mxu0 0
  %275 = vmatpush.bf16.msra.mxu0 0
  %276 = vmatpush.bf16.msra.mxu0 0
  %277 = vmatpush.bf16.msra.mxu0 %v208
  %278 = vmatpush.bf16.msra.mxu0 %v160
  %279 = vmatpush.bf16.msra.mxu0 %v154
  %280 = vmatpush.bf16.msra.mxu0 %v148
  %281 = vmatmul.bf16.gmra.mxu0 %v189
  %v282 = vpop.f32.mrf.mxu0
  %v283 = vadd.f32 %v54, %v282
  %v284 = vpop.f32.mrf.mxu0
  %v285 = vadd.f32 %v54, %v284
  %286 = vmatmul.bf16.gmra.mxu0 %v192
  %v287 = vpop.f32.mrf.mxu0
  %v288 = vadd.f32 %v54, %v287
  %v289 = vpop.f32.mrf.mxu0
  %v290 = vadd.f32 %v54, %v289
  %291 = vdwg.mxu0
  %292 = vmatpush.bf16.msra.mxu0 0
  %293 = vmatpush.bf16.msra.mxu0 0
  %294 = vmatpush.bf16.msra.mxu0 0
  %295 = vmatpush.bf16.msra.mxu0 0
  %296 = vmatpush.bf16.msra.mxu0 %v211
  %297 = vmatpush.bf16.msra.mxu0 %v161
  %298 = vmatpush.bf16.msra.mxu0 %v155
  %299 = vmatpush.bf16.msra.mxu0 %v149
  %300 = vmatmul.bf16.gmra.mxu0 %v189
  %v301 = vpop.f32.mrf.mxu0
  %v302 = vadd.f32 %v55, %v301
  %v303 = vpop.f32.mrf.mxu0
  %v304 = vadd.f32 %v55, %v303
  %305 = vmatmul.bf16.gmra.mxu0 %v192
  %v306 = vpop.f32.mrf.mxu0
  %v307 = vadd.f32 %v55, %v306
  %v308 = vpop.f32.mrf.mxu0
  %v309 = vadd.f32 %v55, %v308
  %310 = vdwg.mxu0
  %311 = vmatpush.bf16.msra.mxu0 0
  %312 = vmatpush.bf16.msra.mxu0 0
  %313 = vmatpush.bf16.msra.mxu0 0
  %314 = vmatpush.bf16.msra.mxu0 0
  %315 = vmatpush.bf16.msra.mxu0 %v214
  %316 = vmatpush.bf16.msra.mxu0 %v162
  %317 = vmatpush.bf16.msra.mxu0 %v156
  %318 = vmatpush.bf16.msra.mxu0 %v150
  %319 = vmatmul.bf16.gmra.mxu0 %v189
  %v320 = vpop.f32.mrf.mxu0
  %v321 = vadd.f32 %v56, %v320
  %v322 = vpop.f32.mrf.mxu0
  %v323 = vadd.f32 %v56, %v322
  %324 = vmatmul.bf16.gmra.mxu0 %v192
  %v325 = vpop.f32.mrf.mxu0
  %v326 = vadd.f32 %v56, %v325
  %v327 = vpop.f32.mrf.mxu0
  %v328 = vadd.f32 %v56, %v327
  %329 = vdwg.mxu0
  %v330 = vmax.f32 %v226, 0.0
  %v331 = vmax.f32 %v245, 0.0
  %v332 = vmax.f32 %v264, 0.0
  %v333 = vmax.f32 %v283, 0.0
  %v334 = vmax.f32 %v302, 0.0
  %v335 = vmax.f32 %v321, 0.0
  %v336 = vmax.f32 %v228, 0.0
  %v337 = vmax.f32 %v247, 0.0
  %v338 = vmax.f32 %v266, 0.0
  %v339 = vmax.f32 %v285, 0.0
  %v340 = vmax.f32 %v304, 0.0
  %v341 = vmax.f32 %v323, 0.0
  %v342 = vmax.f32 %v231, 0.0
  %v343 = vmax.f32 %v250, 0.0
  %v344 = vmax.f32 %v269, 0.0
  %v345 = vmax.f32 %v288, 0.0
  %v346 = vmax.f32 %v307, 0.0
  %v347 = vmax.f32 %v326, 0.0
  %v348 = vmax.f32 %v233, 0.0
  %v349 = vmax.f32 %v252, 0.0
  %v350 = vmax.f32 %v271, 0.0
  %v351 = vmax.f32 %v290, 0.0
  %v352 = vmax.f32 %v309, 0.0
  %v353 = vmax.f32 %v328, 0.0
  %358 = vrot.lane.b32.xlu0 %v330, 96
  %v359 = vpop.permute.xlu0 %358
  %360 = vrot.lane.b32.xlu0 %v336, 96
  %v361 = vpop.permute.xlu0 %360
  %362 = vrot.lane.b32.xlu0 %v342, 96
  %v363 = vpop.permute.xlu0 %362
  %364 = vrot.lane.b32.xlu0 %v348, 96
  %v365 = vpop.permute.xlu0 %364
  %v370 = vmax.f32 %v330, %v359
  %v371 = vmax.f32 %v336, %v361
  %v372 = vmax.f32 %v342, %v363
  %v373 = vmax.f32 %v348, %v365
  %374 = vrot.lane.b32.xlu0 %v330, 64
  %v375 = vpop.permute.xlu0 %374
  %376 = vrot.lane.b32.xlu0 %v336, 64
  %v377 = vpop.permute.xlu0 %376
  %378 = vrot.lane.b32.xlu0 %v342, 64
  %v379 = vpop.permute.xlu0 %378
  %380 = vrot.lane.b32.xlu0 %v348, 64
  %v381 = vpop.permute.xlu0 %380
  %v386 = vmax.f32 %v370, %v375
  %v387 = vmax.f32 %v371, %v377
  %v388 = vmax.f32 %v372, %v379
  %v389 = vmax.f32 %v373, %v381
  %390 = vrot.lane.b32.xlu0 %v330, 32
  %v391 = vpop.permute.xlu0 %390
  %392 = vrot.lane.b32.xlu0 %v336, 32
  %v393 = vpop.permute.xlu0 %392
  %394 = vrot.lane.b32.xlu0 %v342, 32
  %v395 = vpop.permute.xlu0 %394
  %396 = vrot.lane.b32.xlu0 %v348, 32
  %v397 = vpop.permute.xlu0 %396
  %v402 = vmax.f32 %v386, %v391
  %v403 = vmax.f32 %v387, %v393
  %v404 = vmax.f32 %v388, %v395
  %v405 = vmax.f32 %v389, %v397
  %v406 = vmax.f32 %v402, %v331
  %v407 = vmax.f32 %v403, %v337
  %v408 = vmax.f32 %v404, %v343
  %v409 = vmax.f32 %v405, %v349
  %414 = vrot.lane.b32.xlu0 %v331, 96
  %v415 = vpop.permute.xlu0 %414
  %416 = vrot.lane.b32.xlu0 %v337, 96
  %v417 = vpop.permute.xlu0 %416
  %418 = vrot.lane.b32.xlu0 %v343, 96
  %v419 = vpop.permute.xlu0 %418
  %420 = vrot.lane.b32.xlu0 %v349, 96
  %v421 = vpop.permute.xlu0 %420
  %v426 = vmax.f32 %v406, %v415
  %v427 = vmax.f32 %v407, %v417
  %v428 = vmax.f32 %v408, %v419
  %v429 = vmax.f32 %v409, %v421
  %v430 = vmax.f32 %v331, %v415
  %v431 = vmax.f32 %v337, %v417
  %v432 = vmax.f32 %v343, %v419
  %v433 = vmax.f32 %v349, %v421
  %438 = vrot.lane.b32.xlu0 %v332, 64
  %v439 = vpop.permute.xlu0 %438
  %440 = vrot.lane.b32.xlu0 %v338, 64
  %v441 = vpop.permute.xlu0 %440
  %442 = vrot.lane.b32.xlu0 %v344, 64
  %v443 = vpop.permute.xlu0 %442
  %444 = vrot.lane.b32.xlu0 %v350, 64
  %v445 = vpop.permute.xlu0 %444
  %v450 = vmax.f32 %v430, %v439
  %v451 = vmax.f32 %v431, %v441
  %v452 = vmax.f32 %v432, %v443
  %v453 = vmax.f32 %v433, %v445
  %454 = vrot.lane.b32.xlu0 %v332, 96
  %v455 = vpop.permute.xlu0 %454
  %456 = vrot.lane.b32.xlu0 %v338, 96
  %v457 = vpop.permute.xlu0 %456
  %458 = vrot.lane.b32.xlu0 %v344, 96
  %v459 = vpop.permute.xlu0 %458
  %460 = vrot.lane.b32.xlu0 %v350, 96
  %v461 = vpop.permute.xlu0 %460
  %v466 = vmax.f32 %v332, %v455
  %v467 = vmax.f32 %v338, %v457
  %v468 = vmax.f32 %v344, %v459
  %v469 = vmax.f32 %v350, %v461
  %v470 = vmax.f32 %v466, %v439
  %v471 = vmax.f32 %v467, %v441
  %v472 = vmax.f32 %v468, %v443
  %v473 = vmax.f32 %v469, %v445
  %478 = vrot.lane.b32.xlu0 %v333, 96
  %v479 = vpop.permute.xlu0 %478
  %480 = vrot.lane.b32.xlu0 %v339, 96
  %v481 = vpop.permute.xlu0 %480
  %482 = vrot.lane.b32.xlu0 %v345, 96
  %v483 = vpop.permute.xlu0 %482
  %484 = vrot.lane.b32.xlu0 %v351, 96
  %v485 = vpop.permute.xlu0 %484
  %v490 = vmax.f32 %v333, %v479
  %v491 = vmax.f32 %v339, %v481
  %v492 = vmax.f32 %v345, %v483
  %v493 = vmax.f32 %v351, %v485
  %494 = vrot.lane.b32.xlu0 %v333, 64
  %v495 = vpop.permute.xlu0 %494
  %496 = vrot.lane.b32.xlu0 %v339, 64
  %v497 = vpop.permute.xlu0 %496
  %498 = vrot.lane.b32.xlu0 %v345, 64
  %v499 = vpop.permute.xlu0 %498
  %500 = vrot.lane.b32.xlu0 %v351, 64
  %v501 = vpop.permute.xlu0 %500
  %v506 = vmax.f32 %v490, %v495
  %v507 = vmax.f32 %v491, %v497
  %v508 = vmax.f32 %v492, %v499
  %v509 = vmax.f32 %v493, %v501
  %514 = vrot.lane.b32.xlu0 %v334, 96
  %v515 = vpop.permute.xlu0 %514
  %516 = vrot.lane.b32.xlu0 %v340, 96
  %v517 = vpop.permute.xlu0 %516
  %518 = vrot.lane.b32.xlu0 %v346, 96
  %v519 = vpop.permute.xlu0 %518
  %520 = vrot.lane.b32.xlu0 %v352, 96
  %v521 = vpop.permute.xlu0 %520
  %v526 = vmax.f32 %v333, %v515
  %v527 = vmax.f32 %v339, %v517
  %v528 = vmax.f32 %v345, %v519
  %v529 = vmax.f32 %v351, %v521
  %530 = vrot.lane.b32.xlu0 %v334, 64
  %v531 = vpop.permute.xlu0 %530
  %532 = vrot.lane.b32.xlu0 %v340, 64
  %v533 = vpop.permute.xlu0 %532
  %534 = vrot.lane.b32.xlu0 %v346, 64
  %v535 = vpop.permute.xlu0 %534
  %536 = vrot.lane.b32.xlu0 %v352, 64
  %v537 = vpop.permute.xlu0 %536
  %v542 = vmax.f32 %v526, %v531
  %v543 = vmax.f32 %v527, %v533
  %v544 = vmax.f32 %v528, %v535
  %v545 = vmax.f32 %v529, %v537
  %v546 = vmax.f32 %v334, %v515
  %v547 = vmax.f32 %v340, %v517
  %v548 = vmax.f32 %v346, %v519
  %v549 = vmax.f32 %v352, %v521
  %554 = vrot.lane.b32.xlu0 %v335, 64
  %v555 = vpop.permute.xlu0 %554
  %556 = vrot.lane.b32.xlu0 %v341, 64
  %v557 = vpop.permute.xlu0 %556
  %558 = vrot.lane.b32.xlu0 %v347, 64
  %v559 = vpop.permute.xlu0 %558
  %560 = vrot.lane.b32.xlu0 %v353, 64
  %v561 = vpop.permute.xlu0 %560
  %v566 = vmax.f32 %v546, %v555
  %v567 = vmax.f32 %v547, %v557
  %v568 = vmax.f32 %v548, %v559
  %v569 = vmax.f32 %v549, %v561
  %574 = vrot.lane.b32.xlu0 %v450, 96
  %v575 = vpop.permute.xlu0 %574
  %576 = vrot.lane.b32.xlu0 %v451, 96
  %v577 = vpop.permute.xlu0 %576
  %578 = vrot.lane.b32.xlu0 %v452, 96
  %v579 = vpop.permute.xlu0 %578
  %580 = vrot.lane.b32.xlu0 %v453, 96
  %v581 = vpop.permute.xlu0 %580
  %590 = vrot.lane.b32.xlu0 %v470, 32
  %v591 = vpop.permute.xlu0 %590
  %592 = vrot.lane.b32.xlu0 %v471, 32
  %v593 = vpop.permute.xlu0 %592
  %594 = vrot.lane.b32.xlu0 %v472, 32
  %v595 = vpop.permute.xlu0 %594
  %596 = vrot.lane.b32.xlu0 %v473, 32
  %v597 = vpop.permute.xlu0 %596
  %606 = vrot.lane.b32.xlu0 %v506, 96
  %v607 = vpop.permute.xlu0 %606
  %608 = vrot.lane.b32.xlu0 %v507, 96
  %v609 = vpop.permute.xlu0 %608
  %610 = vrot.lane.b32.xlu0 %v508, 96
  %v611 = vpop.permute.xlu0 %610
  %612 = vrot.lane.b32.xlu0 %v509, 96
  %v613 = vpop.permute.xlu0 %612
  %622 = vrot.lane.b32.xlu0 %v542, 32
  %v623 = vpop.permute.xlu0 %622
  %624 = vrot.lane.b32.xlu0 %v543, 32
  %v625 = vpop.permute.xlu0 %624
  %626 = vrot.lane.b32.xlu0 %v544, 32
  %v627 = vpop.permute.xlu0 %626
  %628 = vrot.lane.b32.xlu0 %v545, 32
  %v629 = vpop.permute.xlu0 %628
  %638 = vrot.lane.b32.xlu0 %v566, 96
  %v639 = vpop.permute.xlu0 %638
  %640 = vrot.lane.b32.xlu0 %v567, 96
  %v641 = vpop.permute.xlu0 %640
  %642 = vrot.lane.b32.xlu0 %v568, 96
  %v643 = vpop.permute.xlu0 %642
  %644 = vrot.lane.b32.xlu0 %v569, 96
  %v645 = vpop.permute.xlu0 %644
  %vm650 = vcmask 261120
  %v651 = vsel %vm650, %v426, %v575
  %v652 = vsel %vm650, %v427, %v577
  %v653 = vsel %vm650, %v428, %v579
  %v654 = vsel %vm650, %v429, %v581
  %vm655 = vcmask 523264
  %v656 = vsel %vm655, %v651, %v591
  %v657 = vsel %vm655, %v652, %v593
  %v658 = vsel %vm655, %v653, %v595
  %v659 = vsel %vm655, %v654, %v597
  %vm660 = vcmask 785408
  %v661 = vsel %vm660, %v656, %v607
  %v662 = vsel %vm660, %v657, %v609
  %v663 = vsel %vm660, %v658, %v611
  %v664 = vsel %vm660, %v659, %v613
  %v665 = vsel %vm650, %v623, %v639
  %v666 = vsel %vm650, %v625, %v641
  %v667 = vsel %vm650, %v627, %v643
  %v668 = vsel %vm650, %v629, %v645
  %v669 = vpack.c.bf16 %v662, %v661
  %v670 = vpack.c.bf16 %v666, %v665
  %v671 = vpack.c.bf16 %v664, %v663
  %v672 = vpack.c.bf16 %v668, %v667
  %v673 = vld [vmem:[%s3] sm:$0xff]
  %v674 = vld [vmem:[%s3 + $0x8] sm:$0xff]
  %v675 = vld [vmem:[%s3 + $0x10] sm:$0xff]
  %v676 = vld [vmem:[%s3 + $0x18] sm:$0xff]
  %v677 = vld [vmem:[%s3 + $0x20] sm:$0xff]
  %v678 = vld [vmem:[%s3 + $0x28] sm:$0xff]
  %v679 = vld [vmem:[%s3 + $0x30] sm:$0xff]
  %v680 = vld [vmem:[%s3 + $0x38] sm:$0xff]
  %v681 = vld [vmem:[%s3 + $0x40] sm:$0xff]
  %v682 = vld [vmem:[%s3 + $0x48] sm:$0xff]
  %v683 = vld [vmem:[%s3 + $0x50] sm:$0xff]
  %v684 = vld [vmem:[%s3 + $0x58] sm:$0xff]
  %v685 = vld [vmem:[%s3 + $0x60] sm:$0xff]
  %v686 = vld [vmem:[%s3 + $0x68] sm:$0xff]
  %v687 = vld [vmem:[%s3 + $0x70] sm:$0xff]
  %v688 = vld [vmem:[%s3 + $0x78] sm:$0xff]
  %v689 = vld [vmem:[%s3 + $0x80] sm:$0xff]
  %v690 = vld [vmem:[%s3 + $0x88] sm:$0xff]
  %v691 = vld [vmem:[%s3 + $0x90] sm:$0xff]
  %v692 = vld [vmem:[%s3 + $0x98] sm:$0xff]
  %v693 = vld [vmem:[%s3 + $0xa0] sm:$0xff]
  %v694 = vld [vmem:[%s3 + $0xa8] sm:$0xff]
  %v695 = vld [vmem:[%s3 + $0xb0] sm:$0xff]
  %v696 = vld [vmem:[%s3 + $0xb8] sm:$0xff]
  %v697 = vld [vmem:[%s4] sm:$0x3]
  %v699 = vperm.slane %v697, 0
  %v700 = vperm.slane %v697, 1
  %v727 = vunpack.c.l.b16 %v673
  %v728 = vunpack.c.h.b16 %v673
  %v729 = vunpack.c.l.b16 %v674
  %v730 = vunpack.c.h.b16 %v674
  %v731 = vunpack.c.l.b16 %v675
  %v732 = vunpack.c.h.b16 %v675
  %v733 = vunpack.c.l.b16 %v676
  %v734 = vunpack.c.h.b16 %v676
  %v735 = vunpack.c.l.b16 %v677
  %v736 = vunpack.c.h.b16 %v677
  %v737 = vunpack.c.l.b16 %v678
  %v738 = vunpack.c.h.b16 %v678
  %v739 = vunpack.c.l.b16 %v679
  %v740 = vunpack.c.h.b16 %v679
  %v741 = vunpack.c.l.b16 %v680
  %v742 = vunpack.c.h.b16 %v680
  %v743 = vunpack.c.l.b16 %v681
  %v744 = vunpack.c.h.b16 %v681
  %v745 = vunpack.c.l.b16 %v682
  %v746 = vunpack.c.h.b16 %v682
  %v747 = vunpack.c.l.b16 %v683
  %v748 = vunpack.c.h.b16 %v683
  %v749 = vunpack.c.l.b16 %v684
  %v750 = vunpack.c.h.b16 %v684
  %v751 = vunpack.c.l.b16 %v685
  %v752 = vunpack.c.h.b16 %v685
  %v753 = vunpack.c.l.b16 %v686
  %v754 = vunpack.c.h.b16 %v686
  %v755 = vunpack.c.l.b16 %v687
  %v756 = vunpack.c.h.b16 %v687
  %v757 = vunpack.c.l.b16 %v688
  %v758 = vunpack.c.h.b16 %v688
  %v759 = vunpack.c.l.b16 %v689
  %v760 = vunpack.c.h.b16 %v689
  %v761 = vunpack.c.l.b16 %v690
  %v762 = vunpack.c.h.b16 %v690
  %v763 = vunpack.c.l.b16 %v691
  %v764 = vunpack.c.h.b16 %v691
  %v765 = vunpack.c.l.b16 %v692
  %v766 = vunpack.c.h.b16 %v692
  %v767 = vunpack.c.l.b16 %v693
  %v768 = vunpack.c.h.b16 %v693
  %v769 = vunpack.c.l.b16 %v694
  %v770 = vunpack.c.h.b16 %v694
  %v771 = vunpack.c.l.b16 %v695
  %v772 = vunpack.c.h.b16 %v695
  %v773 = vunpack.c.l.b16 %v696
  %v774 = vunpack.c.h.b16 %v696
  %v775 = vpack.c.b16 %v729, %v727
  %v776 = vpack.c.b16 %v730, %v728
  %v777 = vpack.c.b16 %v733, %v731
  %v778 = vpack.c.b16 %v734, %v732
  %v779 = vpack.c.b16 %v737, %v735
  %v780 = vpack.c.b16 %v738, %v736
  %v781 = vpack.c.b16 %v741, %v739
  %v782 = vpack.c.b16 %v742, %v740
  %v783 = vpack.c.b16 %v745, %v743
  %v784 = vpack.c.b16 %v746, %v744
  %v785 = vpack.c.b16 %v749, %v747
  %v786 = vpack.c.b16 %v750, %v748
  %v787 = vpack.c.b16 %v753, %v751
  %v788 = vpack.c.b16 %v754, %v752
  %v789 = vpack.c.b16 %v757, %v755
  %v790 = vpack.c.b16 %v758, %v756
  %v791 = vpack.c.b16 %v761, %v759
  %v792 = vpack.c.b16 %v762, %v760
  %v793 = vpack.c.b16 %v765, %v763
  %v794 = vpack.c.b16 %v766, %v764
  %v795 = vpack.c.b16 %v769, %v767
  %v796 = vpack.c.b16 %v770, %v768
  %v797 = vpack.c.b16 %v773, %v771
  %v798 = vpack.c.b16 %v774, %v772
  %v824 = vsel %vm655, %v670, 0
  %v827 = vsel %vm655, %v672, 0
  %829 = vmatpush.bf16.msra.mxu0 %v789
  %830 = vmatpush.bf16.msra.mxu0 %v787
  %831 = vmatpush.bf16.msra.mxu0 %v785
  %832 = vmatpush.bf16.msra.mxu0 %v783
  %833 = vmatpush.bf16.msra.mxu0 %v781
  %834 = vmatpush.bf16.msra.mxu0 %v779
  %835 = vmatpush.bf16.msra.mxu0 %v777
  %836 = vmatpush.bf16.msra.mxu0 %v775
  %837 = vmatmul.bf16.gmra.mxu0 %v669
  %v838 = vpop.f32.mrf.mxu0
  %v839 = vadd.f32 %v699, %v838
  %v840 = vpop.f32.mrf.mxu0
  %v841 = vadd.f32 %v699, %v840
  %842 = vmatmul.bf16.gmra.mxu0 %v671
  %v843 = vpop.f32.mrf.mxu0
  %v844 = vadd.f32 %v699, %v843
  %v845 = vpop.f32.mrf.mxu0
  %v846 = vadd.f32 %v699, %v845
  %847 = vdwg.mxu0
  %848 = vmatpush.bf16.msra.mxu0 0
  %849 = vmatpush.bf16.msra.mxu0 0
  %850 = vmatpush.bf16.msra.mxu0 0
  %851 = vmatpush.bf16.msra.mxu0 0
  %852 = vmatpush.bf16.msra.mxu0 %v797
  %853 = vmatpush.bf16.msra.mxu0 %v795
  %854 = vmatpush.bf16.msra.mxu0 %v793
  %855 = vmatpush.bf16.msra.mxu0 %v791
  %856 = vmatmul.bf16.gmra.mxu0 %v824
  %v857 = vpop.f32.mrf.mxu0
  %v858 = vadd.f32 %v839, %v857
  %v859 = vpop.f32.mrf.mxu0
  %v860 = vadd.f32 %v841, %v859
  %861 = vmatmul.bf16.gmra.mxu0 %v827
  %v862 = vpop.f32.mrf.mxu0
  %v863 = vadd.f32 %v844, %v862
  %v864 = vpop.f32.mrf.mxu0
  %v865 = vadd.f32 %v846, %v864
  %866 = vdwg.mxu0
  %867 = vmatpush.bf16.msra.mxu0 %v790
  %868 = vmatpush.bf16.msra.mxu0 %v788
  %869 = vmatpush.bf16.msra.mxu0 %v786
  %870 = vmatpush.bf16.msra.mxu0 %v784
  %871 = vmatpush.bf16.msra.mxu0 %v782
  %872 = vmatpush.bf16.msra.mxu0 %v780
  %873 = vmatpush.bf16.msra.mxu0 %v778
  %874 = vmatpush.bf16.msra.mxu0 %v776
  %875 = vmatmul.bf16.gmra.mxu0 %v669
  %v876 = vpop.f32.mrf.mxu0
  %v877 = vadd.f32 %v700, %v876
  %v878 = vpop.f32.mrf.mxu0
  %v879 = vadd.f32 %v700, %v878
  %880 = vmatmul.bf16.gmra.mxu0 %v671
  %v881 = vpop.f32.mrf.mxu0
  %v882 = vadd.f32 %v700, %v881
  %v883 = vpop.f32.mrf.mxu0
  %v884 = vadd.f32 %v700, %v883
  %885 = vdwg.mxu0
  %886 = vmatpush.bf16.msra.mxu0 0
  %887 = vmatpush.bf16.msra.mxu0 0
  %888 = vmatpush.bf16.msra.mxu0 0
  %889 = vmatpush.bf16.msra.mxu0 0
  %890 = vmatpush.bf16.msra.mxu0 %v798
  %891 = vmatpush.bf16.msra.mxu0 %v796
  %892 = vmatpush.bf16.msra.mxu0 %v794
  %893 = vmatpush.bf16.msra.mxu0 %v792
  %894 = vmatmul.bf16.gmra.mxu0 %v824
  %v895 = vpop.f32.mrf.mxu0
  %v896 = vadd.f32 %v877, %v895
  %v897 = vpop.f32.mrf.mxu0
  %v898 = vadd.f32 %v879, %v897
  %899 = vmatmul.bf16.gmra.mxu0 %v827
  %v900 = vpop.f32.mrf.mxu0
  %v901 = vadd.f32 %v882, %v900
  %v902 = vpop.f32.mrf.mxu0
  %v903 = vadd.f32 %v884, %v902
  %904 = vdwg.mxu0
  %v905 = vmax.f32 %v858, 0.0
  %v906 = vmax.f32 %v896, 0.0
  %v907 = vmax.f32 %v860, 0.0
  %v908 = vmax.f32 %v898, 0.0
  %v909 = vmax.f32 %v863, 0.0
  %v910 = vmax.f32 %v901, 0.0
  %v911 = vmax.f32 %v865, 0.0
  %v912 = vmax.f32 %v903, 0.0
  %913 = vst [vmem:[%s5] sm:$0xff] %v905
  %914 = vst.msk [vmem:[%s5 + $0x8] sm:$0xff] %vm655, %v906
  %915 = vst [vmem:[%s5 + $0x10] sm:$0xff] %v907
  %916 = vst.msk [vmem:[%s5 + $0x18] sm:$0xff] %vm655, %v908
  %917 = vst [vmem:[%s5 + $0x20] sm:$0xff] %v909
  %918 = vst.msk [vmem:[%s5 + $0x28] sm:$0xff] %vm655, %v910
  %919 = vst [vmem:[%s5 + $0x30] sm:$0xff] %v911
  %920 = vst.msk [vmem:[%s5 + $0x38] sm:$0xff] %vm655, %v912
  // Predicated region
  $region22: #{gesture_extractor_forward.1} parent=0 // pred_check
    _
  $region23: #{gesture_extractor_forward.1} parent=0 // pred_check_branch
    %922 = sbr.rel (0) target = $region25
  $region24: #{gesture_extractor_forward.1} parent=0 // pred_region
    _
  $region25: #{gesture_extractor_forward.1} parent=0 // pred_fallthru
    _
  // Predicated region
  $region26: #{gesture_extractor_forward.1} parent=0 // pred_check
    _
  $region27: #{gesture_extractor_forward.1} parent=0 // pred_check_branch
    %924 = sbr.rel (0) target = $region29
  $region28: #{gesture_extractor_forward.1} parent=0 // pred_region
    _
  $region29: #{gesture_extractor_forward.1} parent=0 // pred_fallthru
    _

</llo_original>
